<compile_context>
chip_gen: v7x
topology: tpu7x:2x2x1
jax: 0.10.0
libtpu: 0.0.40
codegen_flags: <defaults>
</compile_context>

<pallas_src>
import functools

import jax
import jax.numpy as jnp
from jax.experimental import pallas as pl
from jax.experimental.pallas import tpu as pltpu


def _hard_sigmoid_kernel(x_ref, o_ref):
    x = x_ref[...]
    # relu6(x + 3) / 6  ==  clamp(x + 3, 0, 6) * (1/6).  Weak-typed constants
    # keep the math in x's dtype (matches PyTorch half-precision behavior).
    o_ref[...] = (jnp.clip(x + 3.0, 0.0, 6.0) * (1.0 / 6.0)).astype(o_ref.dtype)


def _min_sublane(dtype) -> int:
    # Minimum second-to-last tile dim: 8 (32-bit), 16 (16-bit), 32 (8-bit).
    itemsize = jnp.dtype(dtype).itemsize
    return max(8, 32 // itemsize)


def _round_up(x: int, m: int) -> int:
    return -(-x // m) * m


@functools.lru_cache(maxsize=None)
def _vmem_capacity_bytes() -> int:
    """Physical VMEM per TensorCore; conservative fallback if query fails."""
    try:
        return int(pltpu.get_tpu_info().vmem_capacity_bytes)
    except Exception:
        return 64 << 20  # v7x per-core size: safe lower bound on all parts


@functools.lru_cache(maxsize=None)
def _num_tensorcores() -> int:
    """TensorCores behind one JAX device (megacore sharding); 1 if unknown."""
    try:
        kind = jax.devices()[0].device_kind.lower()
    except Exception:
        return 1
    # v7x / v4 / v5p expose 2 TensorCores per device; v5e / v6e expose 1.
    if "v7" in kind or "v4" in kind or "v5p" in kind:
        return 2
    return 1


def _choose_block_rows(rows: int, bytes_per_row: int, min_sub: int,
                       block_bytes: int, n_cores: int) -> int:
    """Pick the block row count; grid length is cdiv(rows, block_rows)."""
    # Rows giving ~block_bytes per block, floored to a sublane multiple.
    tgt = max(min_sub, (block_bytes // bytes_per_row) // min_sub * min_sub)

    if rows <= tgt:
        # Whole array fits in one block.  On megacore parts split a large
        # array into 2*n_cores blocks so the "parallel" grid axis feeds every
        # TensorCore with >= 2 steps (restores per-core in/out DMA overlap).
        # Single-core parts (v5e/v6e) keep the single block: an extra grid
        # step there is pure overhead.
        if (n_cores >= 2 and rows >= 2 * n_cores * min_sub
                and rows * bytes_per_row >= (1 << 20)):
            return min(rows, _round_up(pl.cdiv(rows, 2 * n_cores), min_sub))
        return rows  # full second-to-last dim: always a legal block shape

    blocks = pl.cdiv(rows, tgt)
    if n_cores >= 2:
        # Grid length a multiple of n_cores with >= 2 steps per core avoids a
        # TensorCore sitting idle on odd/small grids.
        blocks = _round_up(max(blocks, 2 * n_cores), n_cores)
    br = max(min_sub, _round_up(pl.cdiv(rows, blocks), min_sub))
    return min(rows, br)


def hard_sigmoid(x: jax.Array, *, block_bytes=None,
                 donate_input: bool = False) -> jax.Array:
    """Elementwise hard-sigmoid matching PyTorch x.add_(3).clamp_(0,6).div_(6).

    block_bytes defaults to ~8 MiB per block and is clamped so the 4 pipelined
    buffers (2 in + 2 out) plus headroom fit the chip's physical VMEM;
    vmem_limit_bytes is raised explicitly to match (the scoped default of
    16 MiB on v5e / 32 MiB on v6e/v7x would otherwise reject or shrink it).
    Set donate_input=True only when the caller actually donates x (enables HBM
    buffer reuse via input_output_aliases); otherwise XLA inserts a copy.
    """
    orig_shape = x.shape
    orig_dtype = x.dtype
    n = x.size
    if n == 0:
        return x

    itemsize = jnp.dtype(orig_dtype).itemsize
    min_sub = _min_sublane(orig_dtype)
    vmem_cap = _vmem_capacity_bytes()
    n_cores = _num_tensorcores()
    headroom = 8 << 20

    if block_bytes is None:
        block_bytes = 8 << 20
    # Never let 2 in + 2 out pipelined buffers (+ headroom) exceed physical
    # VMEM (64 MiB/TC on v7x, 128 MiB on v5e/v6e).  Depth stays at Buffered(2):
    # deeper buffering buys nothing for a pure streaming kernel.
    block_bytes = min(int(block_bytes),
                      max(1 << 20, (vmem_cap - 2 * headroom) // 4))

    # Widest lane count (multiple of 128, up to 1024) dividing n exactly:
    # flatten/unflatten are then metadata-only (no extra HBM passes).
    lanes = next((c for c in (1024, 512, 256, 128) if n % c == 0), None)

    if lanes is not None:
        rows = n // lanes
        bytes_per_row = lanes * itemsize
        block_rows = _choose_block_rows(rows, bytes_per_row, min_sub,
                                        block_bytes, n_cores)
        grid = (pl.cdiv(rows, block_rows),)
        block_nbytes = block_rows * bytes_per_row
        in_spec = pl.BlockSpec((block_rows, lanes), lambda i: (i, 0))
        out_spec = pl.BlockSpec((block_rows, lanes), lambda i: (i, 0))
        x_view = x.reshape(rows, lanes)
        out_shape = jax.ShapeDtypeStruct((rows, lanes), orig_dtype)
    else:
        # Ragged fallback (n % 128 != 0): single pallas_call over the unpadded
        # flat array with 1-D, 128-aligned blocks; Pallas masks the tail of
        # the last block, so there is no jnp.pad / slice HBM round trip.
        # Block kept modest (<= 128K elems) to be conservative about the
        # sublane-padded VMEM footprint of 1-D refs.
        target = max(1024, min(128 * 1024,
                               (block_bytes // itemsize) // 1024 * 1024))
        block_elems = n if n <= target else target  # full dim always legal
        grid = (pl.cdiv(n, block_elems),)
        # Budget pessimistically for 8x sublane padding of 1-D VMEM refs.
        block_nbytes = block_elems * itemsize * 8
        in_spec = pl.BlockSpec((block_elems,), lambda i: (i,))
        out_spec = pl.BlockSpec((block_elems,), lambda i: (i,))
        x_view = x.reshape(-1)
        out_shape = jax.ShapeDtypeStruct((n,), orig_dtype)

    vmem_limit = int(min(max(vmem_cap - headroom, 32 << 20),
                         max(32 << 20, 4 * block_nbytes + headroom)))

    out = pl.pallas_call(
        _hard_sigmoid_kernel,
        out_shape=out_shape,
        grid_spec=pltpu.PrefetchScalarGridSpec(
            num_scalar_prefetch=0,
            grid=grid,
            in_specs=[in_spec],
            out_specs=out_spec,
        ),
        compiler_params=pltpu.CompilerParams(
            dimension_semantics=("parallel",),
            vmem_limit_bytes=vmem_limit,
        ),
        input_output_aliases=({0: 0} if donate_input else {}),
    )(x_view)

    return out.reshape(orig_shape)


def hard_sigmoid_ref(x: jax.Array) -> jax.Array:
    return jnp.clip(x + 3.0, 0.0, 6.0) / 6.0


if __name__ == "__main__":
    key = jax.random.PRNGKey(0)

    # Main test: NCHW input consistent with the module (batch=2, C=4, 16x16).
    x = jax.random.normal(key, (2, 4, 16, 16), dtype=jnp.float32) * 4.0
    y = jax.block_until_ready(hard_sigmoid(x))
    y_ref = hard_sigmoid_ref(x)
    assert y.shape == x.shape and y.dtype == x.dtype
    assert jnp.allclose(y, y_ref, atol=1e-6, rtol=1e-6), "mismatch vs reference"

    # Multi-block aligned path: small block_bytes forces several grid steps.
    k1, _ = jax.random.split(key)
    x2 = jax.random.normal(k1, (2, 32, 32, 32), dtype=jnp.float32) * 4.0
    y2 = jax.block_until_ready(hard_sigmoid(x2, block_bytes=16 * 1024))
    assert jnp.allclose(y2, hard_sigmoid_ref(x2), atol=1e-6, rtol=1e-6)

    # Ragged path (n % 128 != 0): single-block 1-D, no pad/slice round trip.
    k2, _ = jax.random.split(k1)
    x3 = jax.random.normal(k2, (3, 5, 7), dtype=jnp.float32) * 4.0
    y3 = jax.block_until_ready(hard_sigmoid(x3))
    assert y3.shape == x3.shape
    assert jnp.allclose(y3, hard_sigmoid_ref(x3), atol=1e-6, rtol=1e-6)

    # Ragged multi-block path: partial (masked) last 1-D block.
    k3, _ = jax.random.split(k2)
    x4 = jax.random.normal(k3, (5, 1000), dtype=jnp.float32) * 4.0
    y4 = jax.block_until_ready(hard_sigmoid(x4, block_bytes=4 * 1024))
    assert jnp.allclose(y4, hard_sigmoid_ref(x4), atol=1e-6, rtol=1e-6)

    print("KERNEL_OK")
</pallas_src>

<mosaic_0001>
module attributes {stable_mosaic.version = 11 : i64} {
  func.func @_hard_sigmoid_kernel(%arg0: i32, %arg1: memref<2x1024xf32, #tpu.memory_space<vmem>>, %arg2: memref<2x1024xf32, #tpu.memory_space<vmem>>) attributes {dimension_semantics = [#tpu.dimension_semantics<parallel>], iteration_bounds = array<i64: 1>, scalar_prefetch = 0 : i64, scratch_operands = 0 : i64, tpu.core_type = #tpu.core_type<tc>, window_params = [{transform_indices = @transform_0, window_bounds = array<i64: 2, 1024>}, {transform_indices = @transform_1, window_bounds = array<i64: 2, 1024>}]} {
    %c0 = arith.constant 0 : index
    %c0_0 = arith.constant 0 : index
    %0 = vector.load %arg1[%c0, %c0_0] : memref<2x1024xf32, #tpu.memory_space<vmem>>, vector<2x1024xf32>
    %cst = arith.constant 3.000000e+00 : f32
    %1 = vector.broadcast %cst : f32 to vector<2x1024xf32>
    %2 = arith.addf %0, %1 : vector<2x1024xf32>
    %cst_1 = arith.constant 0.000000e+00 : f32
    %cst_2 = arith.constant 6.000000e+00 : f32
    %3 = vector.broadcast %cst_1 : f32 to vector<2x1024xf32>
    %4 = arith.maximumf %3, %2 : vector<2x1024xf32>
    %5 = vector.broadcast %cst_2 : f32 to vector<2x1024xf32>
    %6 = arith.minimumf %5, %4 : vector<2x1024xf32>
    %cst_3 = arith.constant 0.166666672 : f32
    %7 = vector.broadcast %cst_3 : f32 to vector<2x1024xf32>
    %8 = arith.mulf %6, %7 : vector<2x1024xf32>
    %c0_4 = arith.constant 0 : index
    %c0_5 = arith.constant 0 : index
    %9 = vector.load %arg2[%c0_4, %c0_5] : memref<2x1024xf32, #tpu.memory_space<vmem>>, vector<2x1024xf32>
    tpu.vector_store %arg2[%c0_4, %c0_5], %8 {strides = array<i32>} : memref<2x1024xf32, #tpu.memory_space<vmem>>, vector<2x1024xf32>,
    return
  }
  func.func @transform_0(%arg0: i32) -> (i32, i32) {
    %c0_i32 = arith.constant 0 : i32
    %c0_i32_0 = arith.constant 0 : i32
    return %arg0, %c0_i32 : i32, i32
  }
  func.func @transform_1(%arg0: i32) -> (i32, i32) {
    %c0_i32 = arith.constant 0 : i32
    %c0_i32_0 = arith.constant 0 : i32
    return %arg0, %c0_i32 : i32, i32
  }
}

</mosaic_0001>

<llo_original>
// kernel: tpu_custom_call.1
$region0: #{tpu_custom_call.1}
  #allocation0 [shape = 'u32[]', space=smem, size = 0x4, offset = 0x4, fixed_abs, tag = 'smem constant byte address 0x4 - core index']
  #allocation1 [shape = 'u32[144,128]{1,0:T(1,128)}', space=vmem, size = 0x12000, scoped, tag = 'internal scratch']
  %s0 = inlined_call_operand.hbm [shape: f32[2,1024], index: 0, kind: input, shape index: {}]
  %s1 = inlined_call_operand.hbm [shape: f32[2,1024], index: 1, kind: output, shape index: {}]
  %s2 = sld [smem:[#allocation0]]
  $region18: #{tpu_custom_call.1} parent=0
    _
  %s4 = ssub.s32 1, %s2
  %s5 = scalar_select 0, %s4, %s2
  $region1: #{tpu_custom_call.1} parent=0
    #allocation2 [shape = 'u8[8192]{0}', space=vmem, size = 0x2000, scoped, tag = 'input window, operand 0, single buffered']
    #allocation3 [shape = 's32[1]{0}', space=sflag, size = 0x4, scoped, tag = 'scoped memory for tpu_custom_call.1']
    #allocation4 [shape = 's32[1]{0}', space=sflag, size = 0x4, scoped, tag = 'scoped memory for tpu_custom_call.1']
    #allocation5 [shape = 'u8[8192]{0}', space=vmem, size = 0x2000, scoped, tag = 'output window, operand 0, single buffered']
    %6 = vsyncpa [#allocation3], 0
    %7 = vsyncpa [#allocation4], 0
    // Predicated region
    $region2: #{tpu_custom_call.1} parent=1 // pred_check
      _
    $region3: #{tpu_custom_call.1} parent=1 // pred_check_branch
      %9 = sbr.rel (0) target = $region5
    $region4: #{tpu_custom_call.1} parent=1 // pred_region
      %s11 = ssub.s32 256, 256
      %12 = vsyncadd [#allocation3], %s11
      %s14 = sshll.u32 [#allocation2], 4
      %s15 = int_to_ptr.vmem [resolvable:$true] %s14
      %17 = dma.hbm_to_vmem [thread:$0]  %s0, 256, %s15, [#allocation3]
    $region5: #{tpu_custom_call.1} parent=1 // pred_fallthru
      _
    // Predicated region
    $region6: #{tpu_custom_call.1} parent=1 // pred_check
      _
    $region7: #{tpu_custom_call.1} parent=1 // pred_check_branch
      %19 = sbr.rel (0) target = $region9
    $region8: #{tpu_custom_call.1} parent=1 // pred_region
      %20 = dma.done [#allocation3], 256
    $region9: #{tpu_custom_call.1} parent=1 // pred_fallthru
      _
    %v21 = vld [vmem:[#allocation2] sm:$0xff]
    %v22 = vld [vmem:[#allocation2 + $0x8] sm:$0xff]
    %v23 = vadd.f32 %v21, 3.0
    %v24 = vadd.f32 %v22, 3.0
    %v25 = vmax.f32 %v23, 0.0
    %v26 = vmax.f32 %v24, 0.0
    %v27 = vmin.f32 %v25, 6.0
    %v28 = vmin.f32 %v26, 6.0
    %v29 = vmul.f32 %v27, 0.16666667
    %v30 = vmul.f32 %v28, 0.16666667
    %31 = vst [vmem:[#allocation5] sm:$0xff] %v29
    %32 = vst [vmem:[#allocation5 + $0x8] sm:$0xff] %v30
    // Predicated region
    $region10: #{tpu_custom_call.1} parent=1 // pred_check
      _
    $region11: #{tpu_custom_call.1} parent=1 // pred_check_branch
      %34 = sbr.rel (0) target = $region13
    $region12: #{tpu_custom_call.1} parent=1 // pred_region
      %s36 = ssub.s32 256, 256
      %37 = vsyncadd [#allocation4], %s36
      %s39 = sshll.u32 [#allocation5], 4
      %s40 = int_to_ptr.vmem [resolvable:$true] %s39
      %42 = dma.vmem_to_hbm [thread:$0]  %s40, 256, %s1, [#allocation4]
    $region13: #{tpu_custom_call.1} parent=1 // pred_fallthru
      _
    // Predicated region
    $region14: #{tpu_custom_call.1} parent=1 // pred_check
      _
    $region15: #{tpu_custom_call.1} parent=1 // pred_check_branch
      %44 = sbr.rel (0) target = $region17
    $region16: #{tpu_custom_call.1} parent=1 // pred_region
      %45 = dma.done [#allocation4], 256
    $region17: #{tpu_custom_call.1} parent=1 // pred_fallthru
      _
    %46 = vsyncpa [#allocation3], 1
    %47 = vsyncpa [#allocation4], 1

</llo_original>
